<compile_context>
chip_gen: v6e
topology: v6e:2x2x1
jax: 0.10.0
libtpu: 0.0.40
codegen_flags: <defaults>
</compile_context>

<pallas_src>
import functools
import math

import jax
import jax.numpy as jnp
from jax.experimental import pallas as pl
from jax.experimental.pallas import tpu as pltpu


# --------------------------------------------------------------------------
# Kernels
# --------------------------------------------------------------------------
def first_linear_silu_kernel(t_ref, w1_ref, b1_ref, h_ref, *, half, max_period):
    # t_ref:  (B, 1)    f32   scalar timesteps (resident)
    # w1_ref: (F, tn)   bf16  column tile of the first Linear weight
    # b1_ref: (1, tn)   f32   column tile of the first bias
    # h_ref:  (B, tn)         column tile of SiLU(emb @ w1 + b1)
    cdt = w1_ref.dtype
    # Frequency table rebuilt in-kernel from iota + EUP exp (cheap; avoids an
    # extra input DMA and keeps the kernel free of cross-tile state so the
    # column grid can be megacore-parallel).
    iota = jax.lax.broadcasted_iota(jnp.int32, (1, half), 1)
    freqs = jnp.exp(iota.astype(jnp.float32) * (-math.log(max_period) / half))
    args = t_ref[...] * freqs                                  # (B, half) f32
    # Split-K first Linear: equals concat([cos, sin], -1) @ w1 without ever
    # materializing the concatenated (B, F) embedding (no lane relayout).
    # (Sinusoid cast to the weight dtype keeps the MXU bf16 fast path; keep it
    # f32 here if the tolerance ever tightens -- this matmul is tiny.)
    h = jnp.dot(jnp.cos(args).astype(cdt), w1_ref[:half, :],
                preferred_element_type=jnp.float32)
    h = h + jnp.dot(jnp.sin(args).astype(cdt), w1_ref[half:, :],
                    preferred_element_type=jnp.float32)
    h = h + b1_ref[...]
    h = h * jax.nn.sigmoid(h)                                  # SiLU in f32
    h_ref[...] = h.astype(h_ref.dtype)


def second_linear_kernel(h_ref, w2_ref, b2_ref, out_ref):
    # h_ref:   (B, H)   bf16  full hidden activation (resident, tiny)
    # w2_ref:  (H, tn)  bf16  streamed column tile of the second Linear weight
    # b2_ref:  (1, tn)  f32
    # out_ref: (B, tn)
    y = jnp.dot(h_ref[...], w2_ref[...], preferred_element_type=jnp.float32)
    out_ref[...] = (y + b2_ref[...]).astype(out_ref.dtype)


# --------------------------------------------------------------------------
# Spec / tiling helpers
# --------------------------------------------------------------------------
def _spec(shape, index_map, *, buffers=None):
    """BlockSpec, optionally with an explicit pipeline buffer count.

    Streamed weight tiles benefit from >2 in-flight DMAs (per-step compute is
    near zero, so with the default 2 buffers only ~1 DMA is outstanding).
    Falls back to the default spec if this JAX build does not expose
    pipeline_mode / pl.Buffered.
    """
    if buffers is not None:
        try:
            return pl.BlockSpec(shape, index_map, pipeline_mode=pl.Buffered(buffers))
        except Exception:  # older / stricter builds: keep default buffering
            pass
    return pl.BlockSpec(shape, index_map)


def _pick_col_tile(H, *, max_tn=1024, nbuf=3, elt_bytes=2,
                   stream_vmem_budget=12 * 1024 * 1024):
    """Column tile width for streaming (H, tn) weight tiles.

    Largest multiple of 128 <= max_tn that keeps `nbuf` in-flight (H, tn)
    weight tiles inside `stream_vmem_budget` (comfortable even under v5e's
    16 MiB scoped VMEM default).  Prefers exact divisors of H so every store
    stays lane-dense/unmasked; otherwise returns a 128-multiple tile and lets
    the pl.cdiv grid handle a ragged last tile -- never a single unbounded
    tile.
    """
    cap = (stream_vmem_budget // max(nbuf * H * elt_bytes, 1)) // 128 * 128
    cap = max(128, min(max_tn, cap))
    if H <= cap:
        return H
    for tn in range(cap, 127, -128):
        if H % tn == 0:
            return tn
    return cap   # ragged last tile via pl.cdiv grid


# --------------------------------------------------------------------------
# Wrapper
# --------------------------------------------------------------------------
def timestep_embedder(t, params, frequency_embedding_size=256, max_period=10000,
                      out_dtype=jnp.float32, col_tile_cap=1024, stream_buffers=3):
    """t: (B,) scalar timesteps -> (B, hidden_size) embedding.

    `params = (w1, b1, w2, b2)` with weights already stored in the compute
    dtype (see init_params) -- no per-call weight cast happens here.
    """
    w1, b1, w2, b2 = params
    B = t.shape[0]
    F = frequency_embedding_size
    half = F // 2
    # TODO(synk): odd frequency_embedding_size would need the trailing zero
    # column of the PyTorch code; F=256 is even so it is not exercised.
    assert F % 2 == 0
    H = w1.shape[1]
    assert w1.shape == (F, H) and w2.shape == (H, H)

    cdt = w1.dtype                          # compute dtype (bf16 from init)
    w_bytes = jnp.dtype(cdt).itemsize
    t2d = t.astype(jnp.float32).reshape(B, 1)
    b1r = b1.astype(jnp.float32).reshape(1, H)      # biases are tiny; f32 math
    b2r = b2.astype(jnp.float32).reshape(1, H)

    tn = _pick_col_tile(H, max_tn=col_tile_cap,
                        nbuf=max(stream_buffers or 2, 2), elt_bytes=w_bytes)
    grid = (pl.cdiv(H, tn),)
    cparams = pltpu.CompilerParams(
        dimension_semantics=("parallel",),          # megacore-splits on v7x
        vmem_limit_bytes=32 * 1024 * 1024,
    )

    def _forward(nbuf):
        # ---- kernel 1: h = SiLU(timestep_embedding(t) @ w1 + b1), column-tiled
        k1 = functools.partial(first_linear_silu_kernel,
                               half=half, max_period=max_period)
        cost1 = pl.CostEstimate(
            flops=2 * B * F * H,
            transcendentals=B * F + half,
            bytes_accessed=F * H * w_bytes + H * 4 + B * 4 + B * H * w_bytes)
        h = pl.pallas_call(
            k1,
            out_shape=jax.ShapeDtypeStruct((B, H), cdt),
            grid_spec=pltpu.PrefetchScalarGridSpec(
                num_scalar_prefetch=0, grid=grid,
                in_specs=[
                    pl.BlockSpec((B, 1), lambda j: (0, 0)),        # t (resident)
                    _spec((F, tn), lambda j: (0, j), buffers=nbuf),  # w1 stream
                    pl.BlockSpec((1, tn), lambda j: (0, j)),       # b1 tile
                ],
                out_specs=pl.BlockSpec((B, tn), lambda j: (0, j))),
            compiler_params=cparams, cost_estimate=cost1,
        )(t2d, w1, b1r)

        # ---- kernel 2: out = h @ w2 + b2, w2 streamed in lane-dense column tiles
        cost2 = pl.CostEstimate(
            flops=2 * B * H * H,
            transcendentals=0,
            bytes_accessed=H * H * w_bytes + H * 4 + B * H * w_bytes
                           + B * H * jnp.dtype(out_dtype).itemsize)
        return pl.pallas_call(
            second_linear_kernel,
            out_shape=jax.ShapeDtypeStruct((B, H), out_dtype),
            grid_spec=pltpu.PrefetchScalarGridSpec(
                num_scalar_prefetch=0, grid=grid,
                in_specs=[
                    pl.BlockSpec((B, H), lambda j: (0, 0)),        # h (resident)
                    _spec((H, tn), lambda j: (0, j), buffers=nbuf),  # w2 stream
                    pl.BlockSpec((1, tn), lambda j: (0, j)),       # b2 tile
                ],
                out_specs=pl.BlockSpec((B, tn), lambda j: (0, j))),
            compiler_params=cparams, cost_estimate=cost2,
        )(h, w2, b2r)

    try:
        return _forward(stream_buffers)
    except Exception:
        if not stream_buffers:
            raise
        # pipeline_mode=pl.Buffered not accepted by this JAX/Mosaic build:
        # retry with the default double-buffered pipeline.
        return _forward(None)


# --------------------------------------------------------------------------
# Params / reference / demo
# --------------------------------------------------------------------------
def init_params(key, hidden_size, frequency_embedding_size=256,
                compute_dtype=jnp.bfloat16):
    """Deterministic synthetic init matching nn.Linear shapes.

    Weights are stored (in_features, out_features) and ALREADY in the MXU
    compute dtype, so no per-call conversion (extra HBM read+write of the full
    weights) is needed at forward time.  Biases stay f32.
    """
    k1, k2, k3, k4 = jax.random.split(key, 4)
    F, H = frequency_embedding_size, hidden_size
    w1 = (jax.random.normal(k1, (F, H), jnp.float32) * 0.02).astype(compute_dtype)
    b1 = jax.random.normal(k2, (H,), jnp.float32) * 0.02
    w2 = (jax.random.normal(k3, (H, H), jnp.float32) * 0.02).astype(compute_dtype)
    b2 = jax.random.normal(k4, (H,), jnp.float32) * 0.02
    return w1, b1, w2, b2


def reference(t, params, frequency_embedding_size=256, max_period=10000):
    """Pure-JAX f32 reference reproducing the PyTorch forward."""
    w1, b1, w2, b2 = [p.astype(jnp.float32) for p in params]
    half = frequency_embedding_size // 2
    freqs = jnp.exp(
        -math.log(max_period) * jnp.arange(half, dtype=jnp.float32) / half)
    args = t.astype(jnp.float32)[:, None] * freqs[None, :]
    emb = jnp.concatenate([jnp.cos(args), jnp.sin(args)], axis=-1)
    h = emb @ w1 + b1
    h = h * jax.nn.sigmoid(h)
    return h @ w2 + b2


if __name__ == "__main__":
    B, FREQ = 8, 256
    key = jax.random.PRNGKey(0)
    kp, kt = jax.random.split(key)
    t = jax.random.uniform(kt, (B,), jnp.float32, minval=0.0, maxval=1000.0)

    # (hidden_size, col_tile_cap): exercise the multi-tile streamed path
    # (3 column tiles, parallel grid) and the single-tile path.
    for hidden, cap in ((384, 128), (256, 1024)):
        params = init_params(kp, hidden, FREQ)
        out = jax.block_until_ready(
            timestep_embedder(t, params, FREQ, col_tile_cap=cap))
        ref = reference(t, params, FREQ)
        assert out.shape == (B, hidden)
        # bf16 weights/activations on the MXU (f32 accumulation): compare at
        # bf16-level tolerance against the f32 reference.
        err = float(jnp.max(jnp.abs(out - ref)))
        assert jnp.allclose(out, ref, atol=1e-2, rtol=2e-2), err

    print("KERNEL_OK")
</pallas_src>

<mosaic_0001>
module attributes {stable_mosaic.version = 11 : i64} {
  func.func @first_linear_silu_kernel(%arg0: i32, %arg1: memref<8x1xf32, #tpu.memory_space<vmem>>, %arg2: memref<256x128xbf16, #tpu.memory_space<vmem>>, %arg3: memref<1x128xf32, #tpu.memory_space<vmem>>, %arg4: memref<8x128xbf16, #tpu.memory_space<vmem>>) attributes {dimension_semantics = [#tpu.dimension_semantics<parallel>], iteration_bounds = array<i64: 3>, scalar_prefetch = 0 : i64, scratch_operands = 0 : i64, tpu.core_type = #tpu.core_type<tc>, window_params = [{pipeline_mode = #tpu.pipeline_mode<synchronous>, transform_indices = @transform_0, window_bounds = array<i64: 8, 1>}, {transform_indices = @transform_1, window_bounds = array<i64: 256, 128>}, {transform_indices = @transform_2, window_bounds = array<i64: 1, 128>}, {transform_indices = @transform_3, window_bounds = array<i64: 8, 128>}]} {
    %0 = tpu.iota {dimensions = array<i32: 1>} : vector<1x128xi32>
    %1 = arith.sitofp %0 : vector<1x128xi32> to vector<1x128xf32>
    %cst = arith.constant -0.0719557852 : f32
    %2 = vector.broadcast %cst : f32 to vector<1x128xf32>
    %3 = arith.mulf %1, %2 : vector<1x128xf32>
    %4 = math.exp %3 : vector<1x128xf32>
    %c0 = arith.constant 0 : index
    %c0_0 = arith.constant 0 : index
    %5 = vector.load %arg1[%c0, %c0_0] : memref<8x1xf32, #tpu.memory_space<vmem>>, vector<8x1xf32>
    %6 = vector.broadcast %5 : vector<8x1xf32> to vector<8x128xf32>
    %7 = vector.broadcast %4 : vector<1x128xf32> to vector<8x128xf32>
    %8 = arith.mulf %6, %7 : vector<8x128xf32>
    %9 = math.cos %8 : vector<8x128xf32>
    %10 = arith.truncf %9 : vector<8x128xf32> to vector<8x128xbf16>
    %c0_1 = arith.constant 0 : index
    %c0_2 = arith.constant 0 : index
    %11 = vector.load %arg2[%c0_1, %c0_2] : memref<256x128xbf16, #tpu.memory_space<vmem>>, vector<128x128xbf16>
    %cst_3 = arith.constant dense<0.000000e+00> : vector<8x128xf32>
    %12 = tpu.matmul %10, %11, %cst_3 {dimension_numbers = #tpu.dot_dimension_numbers<[1], [0], [0], [1], [0, 0, 1, 1], [], []>} : vector<8x128xbf16>, vector<128x128xbf16>, vector<8x128xf32> -> vector<8x128xf32>
    %13 = math.sin %8 : vector<8x128xf32>
    %14 = arith.truncf %13 : vector<8x128xf32> to vector<8x128xbf16>
    %c128 = arith.constant 128 : index
    %c0_4 = arith.constant 0 : index
    %15 = vector.load %arg2[%c128, %c0_4] : memref<256x128xbf16, #tpu.memory_space<vmem>>, vector<128x128xbf16>
    %cst_5 = arith.constant dense<0.000000e+00> : vector<8x128xf32>
    %16 = tpu.matmul %14, %15, %cst_5 {dimension_numbers = #tpu.dot_dimension_numbers<[1], [0], [0], [1], [0, 0, 1, 1], [], []>} : vector<8x128xbf16>, vector<128x128xbf16>, vector<8x128xf32> -> vector<8x128xf32>
    %17 = arith.addf %12, %16 : vector<8x128xf32>
    %c0_6 = arith.constant 0 : index
    %c0_7 = arith.constant 0 : index
    %18 = vector.load %arg3[%c0_6, %c0_7] : memref<1x128xf32, #tpu.memory_space<vmem>>, vector<1x128xf32>
    %19 = vector.broadcast %18 : vector<1x128xf32> to vector<8x128xf32>
    %20 = arith.addf %17, %19 : vector<8x128xf32>
    %21 = arith.negf %20 : vector<8x128xf32>
    %22 = math.exp %21 : vector<8x128xf32>
    %cst_8 = arith.constant 1.000000e+00 : f32
    %23 = vector.broadcast %cst_8 : f32 to vector<8x128xf32>
    %24 = arith.addf %23, %22 : vector<8x128xf32>
    %25 = arith.divf %23, %24 : vector<8x128xf32>
    %26 = arith.mulf %20, %25 : vector<8x128xf32>
    %27 = arith.truncf %26 : vector<8x128xf32> to vector<8x128xbf16>
    %c0_9 = arith.constant 0 : index
    %c0_10 = arith.constant 0 : index
    %28 = vector.load %arg4[%c0_9, %c0_10] : memref<8x128xbf16, #tpu.memory_space<vmem>>, vector<8x128xbf16>
    tpu.vector_store %arg4[%c0_9, %c0_10], %27 {strides = array<i32>} : memref<8x128xbf16, #tpu.memory_space<vmem>>, vector<8x128xbf16>,
    return
  }
  func.func @transform_0(%arg0: i32) -> (i32, i32) {
    %c0_i32 = arith.constant 0 : i32
    %c0_i32_0 = arith.constant 0 : i32
    %c0_i32_1 = arith.constant 0 : i32
    return %c0_i32, %c0_i32_0 : i32, i32
  }
  func.func @transform_1(%arg0: i32) -> (i32, i32) {
    %c0_i32 = arith.constant 0 : i32
    %c0_i32_0 = arith.constant 0 : i32
    return %c0_i32, %arg0 : i32, i32
  }
  func.func @transform_2(%arg0: i32) -> (i32, i32) {
    %c0_i32 = arith.constant 0 : i32
    %c0_i32_0 = arith.constant 0 : i32
    return %c0_i32, %arg0 : i32, i32
  }
  func.func @transform_3(%arg0: i32) -> (i32, i32) {
    %c0_i32 = arith.constant 0 : i32
    %c0_i32_0 = arith.constant 0 : i32
    return %c0_i32, %arg0 : i32, i32
  }
}

</mosaic_0001>

<llo_original>
// kernel: tpu_custom_call.1
$region0: #{tpu_custom_call.1}
  #allocation0 [shape = 'u32[]', space=smem, size = 0x4, offset = 0x4, fixed_abs, tag = 'smem constant byte address 0x4 - core index']
  #allocation1 [shape = 'u32[144,128]{1,0:T(1,128)}', space=vmem, size = 0x12000, scoped, tag = 'internal scratch']
  %s0 = inlined_call_operand.vmem [shape: f32[8,1], index: 0, kind: input, shape index: {}]
  %s1 = inlined_call_operand.hbm [shape: bf16[256,384], index: 1, kind: input, shape index: {}]
  %s2 = inlined_call_operand.vmem [shape: f32[1,384], index: 2, kind: input, shape index: {}]
  %s3 = inlined_call_operand.hbm [shape: bf16[8,384], index: 3, kind: output, shape index: {}]
  %s4 = sld [smem:[#allocation0]]
  $region49: #{tpu_custom_call.1} parent=0
    _
  %s6 = ssub.s32 1, %s4
  %s7 = scalar_select 0, %s6, %s4
  $region1: #{tpu_custom_call.1} parent=0
    #allocation2 [shape = 'u8[131072]{0}', space=vmem, size = 0x20000, scoped, tag = 'input window, operand 1']
    #allocation3 [shape = 's32[2]{0}', space=sflag, size = 0x8, scoped, tag = 'scoped memory for tpu_custom_call.1']
    #allocation4 [shape = 's32[2]{0}', space=sflag, size = 0x8, scoped, tag = 'scoped memory for tpu_custom_call.1']
    #allocation5 [shape = 'u8[4096]{0}', space=vmem, size = 0x1000, scoped, tag = 'output window, operand 0']
    %8 = vsyncpa [#allocation3], 0
    %s9 = scalar_lea.sflag [#allocation3], 1
    %10 = vsyncpa %s9, 0
    %11 = vsyncpa [#allocation4], 0
    %s12 = scalar_lea.sflag [#allocation4], 1
    %13 = vsyncpa %s12, 0
    loop: start=0, step=1, limit=5
    $region2: #{tpu_custom_call.1} parent=1 // loop_pre_header
      _
    $region3: #{tpu_custom_call.1} parent=1 // loop_header
      %s15 = sphi 0, %s19
      %p16 = scmp.ge.s32.totalorder %s15, 5
      %s23 = sphi 0, %s23
      %s25 = sphi 0, %s23
      %s26 = sphi 0, %s25
      %s40 = sphi 0, %s26
      %s46 = sphi 0, %s48
      %s49 = sphi 0, %s46
      %s50 = sphi 0, %s49
      %s66 = sphi 0, %s50
      %s72 = sphi 0, %s74
      %s75 = sphi 0, %s72
      %s76 = sphi 0, %s75
      %s92 = sphi 0, %s76
      %s98 = sphi 0, %s100
      %s101 = sphi 0, %s98
      %s102 = sphi 0, %s101
      %s118 = sphi 0, %s102
    $region4: #{tpu_custom_call.1} parent=1 // loop_header_branch
      %18 = sbr.rel (%p16) target = $region8
    $region5: #{tpu_custom_call.1} parent=1 // loop_body
      %s20 = ssub.s32 %s15, 1
      %s21 = ssub.s32 %s15, 2
      %s22 = sadd.s32 %s15, 1
      %s24 = sadd.s32 %s23, 1
      %p27 = scmp.eq.s32.totalorder %s15, 2
      %p28 = scmp.ne.s32.totalorder %s23, %s25
      %p29 = scmp.eq.s32.totalorder %s15, 0
      %p30 = por %p28, %p29
      %p31 = scmp.ne.s32.totalorder %s23, %s25
      %p32 = scmp.eq.s32.totalorder %s20, 2
      %p33 = por %p31, %p32
      %p34 = scmp.ne.s32.totalorder %s25, %s26
      %p35 = scmp.eq.s32.totalorder %s20, 0
      %p36 = por %p34, %p35
      %p37 = scmp.ne.s32.totalorder %s25, %s26
      %p38 = scmp.eq.s32.totalorder %s21, 2
      %p39 = por %p37, %p38
      %p41 = scmp.ne.s32.totalorder %s26, %s40
      %p42 = scmp.eq.s32.totalorder %s21, 0
      %p43 = por %p41, %p42
      %s44 = ssub.s32 %s15, %s22
      %p45 = scmp.eq.s32.totalorder %s44, 0
      %s47 = sadd.s32 %s46, 1
      %s48 = scalar_select %p45, %s46, %s47
      %p51 = pneg %p45
      %p52 = scmp.eq.s32.totalorder %s15, 2
      %p53 = por %p51, %p52
      %p54 = scmp.ne.s32.totalorder %s46, %s49
      %p55 = scmp.eq.s32.totalorder %s15, 0
      %p56 = por %p54, %p55
      %p57 = scmp.ne.s32.totalorder %s46, %s49
      %p58 = scmp.eq.s32.totalorder %s20, 2
      %p59 = por %p57, %p58
      %p60 = scmp.ne.s32.totalorder %s49, %s50
      %p61 = scmp.eq.s32.totalorder %s20, 0
      %p62 = por %p60, %p61
      %p63 = scmp.ne.s32.totalorder %s49, %s50
      %p64 = scmp.eq.s32.totalorder %s21, 2
      %p65 = por %p63, %p64
      %p67 = scmp.ne.s32.totalorder %s50, %s66
      %p68 = scmp.eq.s32.totalorder %s21, 0
      %p69 = por %p67, %p68
      %s70 = ssub.s32 %s15, %s22
      %p71 = scmp.eq.s32.totalorder %s70, 0
      %s73 = sadd.s32 %s72, 1
      %s74 = scalar_select %p71, %s72, %s73
      %p77 = pneg %p71
      %p78 = scmp.eq.s32.totalorder %s15, 2
      %p79 = por %p77, %p78
      %p80 = scmp.ne.s32.totalorder %s72, %s75
      %p81 = scmp.eq.s32.totalorder %s15, 0
      %p82 = por %p80, %p81
      %p83 = scmp.ne.s32.totalorder %s72, %s75
      %p84 = scmp.eq.s32.totalorder %s20, 2
      %p85 = por %p83, %p84
      %p86 = scmp.ne.s32.totalorder %s75, %s76
      %p87 = scmp.eq.s32.totalorder %s20, 0
      %p88 = por %p86, %p87
      %p89 = scmp.ne.s32.totalorder %s75, %s76
      %p90 = scmp.eq.s32.totalorder %s21, 2
      %p91 = por %p89, %p90
      %p93 = scmp.ne.s32.totalorder %s76, %s92
      %p94 = scmp.eq.s32.totalorder %s21, 0
      %p95 = por %p93, %p94
      %s96 = ssub.s32 %s15, %s22
      %p97 = scmp.eq.s32.totalorder %s96, 0
      %s99 = sadd.s32 %s98, 1
      %s100 = scalar_select %p97, %s98, %s99
      %p103 = pneg %p97
      %p104 = scmp.eq.s32.totalorder %s15, 2
      %p105 = por %p103, %p104
      %p106 = scmp.ne.s32.totalorder %s98, %s101
      %p107 = scmp.eq.s32.totalorder %s15, 0
      %p108 = por %p106, %p107
      %p109 = scmp.ne.s32.totalorder %s98, %s101
      %p110 = scmp.eq.s32.totalorder %s20, 2
      %p111 = por %p109, %p110
      %p112 = scmp.ne.s32.totalorder %s101, %s102
      %p113 = scmp.eq.s32.totalorder %s20, 0
      %p114 = por %p112, %p113
      %p115 = scmp.ne.s32.totalorder %s101, %s102
      %p116 = scmp.eq.s32.totalorder %s21, 2
      %p117 = por %p115, %p116
      %p119 = scmp.ne.s32.totalorder %s102, %s118
      %p120 = scmp.eq.s32.totalorder %s21, 0
      %p121 = por %p119, %p120
      %p122 = scmp.le.s32.totalorder 1, %s15
      %p123 = scmp.lt.s32.totalorder %s15, 4
      %p124 = pnand %p122, %p123
      %p125 = pneg %p124
      // Predicated region
      $region9: #{tpu_custom_call.1} parent=5 // pred_check
        _
      $region10: #{tpu_custom_call.1} parent=5 // pred_check_branch
        %127 = sbr.rel (%p124) target = $region12
      $region11: #{tpu_custom_call.1} parent=5 // pred_region
        %s128 = ssub.s32 %s15, 1
        // Predicated region
        $region13: #{tpu_custom_call.1} parent=11 // pred_check
          %p129 = pneg %p36
        $region14: #{tpu_custom_call.1} parent=11 // pred_check_branch
          %131 = sbr.rel (%p129) target = $region16
        $region15: #{tpu_custom_call.1} parent=11 // pred_region
          _
        $region16: #{tpu_custom_call.1} parent=11 // pred_fallthru
          _
      $region12: #{tpu_custom_call.1} parent=5 // pred_fallthru
        _
      %p132 = scmp.lt.s32.totalorder %s15, 3
      // Predicated region
      $region17: #{tpu_custom_call.1} parent=5 // pred_check
        %p133 = pneg %p132
      $region18: #{tpu_custom_call.1} parent=5 // pred_check_branch
        %135 = sbr.rel (%p133) target = $region20
      $region19: #{tpu_custom_call.1} parent=5 // pred_region
        // Predicated region
        $region21: #{tpu_custom_call.1} parent=19 // pred_check
          %p136 = pneg %p56
        $region22: #{tpu_custom_call.1} parent=19 // pred_check_branch
          %138 = sbr.rel (%p136) target = $region24
        $region23: #{tpu_custom_call.1} parent=19 // pred_region
          %s139 = sand.u32 %s46, 1
          %s140 = scalar_lea.sflag [#allocation3], %s139
          %s141 = sand.u32 %s46, 1
          %s142 = smul.addr %s141, 128
          %s143 = scalar_lea.vmem [#allocation2], %s142
          %s145 = ssub.s32 2048, 2048
          %146 = vsyncadd %s140, %s145
          %s147 = smul.addr %s15, 64
          %s148 = scalar_lea.hbm %s1, %s147
          %s149 = sshll.u32 %s143, 4
          %s150 = int_to_ptr.vmem [resolvable:$true] %s149
          %155 = dma.hbm_to_vmem [thread:$0]  %s148, 2048, %s150, %s140, 192, 64, 4
        $region24: #{tpu_custom_call.1} parent=19 // pred_fallthru
          _
        // Predicated region
        $region25: #{tpu_custom_call.1} parent=19 // pred_check
          %p156 = pneg %p82
        $region26: #{tpu_custom_call.1} parent=19 // pred_check_branch
          %158 = sbr.rel (%p156) target = $region28
        $region27: #{tpu_custom_call.1} parent=19 // pred_region
          %p159 = scmp.lt.s32.totalorder %s15, 2
          %s160 = scalar_select %p159, %s15, 2
          %s161 = scalar_lea.vmem %s2, %s160
        $region28: #{tpu_custom_call.1} parent=19 // pred_fallthru
          _
      $region20: #{tpu_custom_call.1} parent=5 // pred_fallthru
        _
      %p162 = scmp.le.s32.totalorder 1, %s15
      %p163 = scmp.lt.s32.totalorder %s15, 4
      %p164 = pnand %p162, %p163
      %p165 = pneg %p164
      // Predicated region
      $region29: #{tpu_custom_call.1} parent=5 // pred_check
        _
      $region30: #{tpu_custom_call.1} parent=5 // pred_check_branch
        %167 = sbr.rel (%p164) target = $region32
      $region31: #{tpu_custom_call.1} parent=5 // pred_region
        %s168 = ssub.s32 %s15, 1
        %s169 = sand.u32 %s49, 1
        %s170 = scalar_lea.sflag [#allocation3], %s169
        %s171 = sand.u32 %s49, 1
        %s172 = smul.addr %s171, 128
        %s173 = scalar_lea.vmem [#allocation2], %s172
        // Predicated region
        $region33: #{tpu_custom_call.1} parent=31 // pred_check
          %p174 = pneg %p62
        $region34: #{tpu_custom_call.1} parent=31 // pred_check_branch
          %176 = sbr.rel (%p174) target = $region36
        $region35: #{tpu_custom_call.1} parent=31 // pred_region
          %177 = dma.done %s170, 2048
        $region36: #{tpu_custom_call.1} parent=31 // pred_fallthru
          _
        %p178 = pneg %p36
        %p179 = pneg %p33
        %s180 = sand.u32 %s49, 1
        %s181 = scalar_lea.sflag [#allocation3], %s180
        %s182 = sand.u32 %s49, 1
        %s183 = smul.addr %s182, 128
        %s184 = scalar_lea.vmem [#allocation2], %s183
        %p185 = pneg %p62
        %p186 = pneg %p59
        %p187 = scmp.lt.s32.totalorder %s20, 2
        %s188 = scalar_select %p187, %s20, 2
        %s189 = scalar_lea.vmem %s2, %s188
        %p190 = pneg %p88
        %p191 = pneg %p85
        %p192 = pneg %p114
        %p193 = pneg %p111
        %s194 = sand.u32 %s101, 1
        %s195 = scalar_lea.sflag [#allocation4], %s194
        %s196 = sand.u32 %s101, 1
        %s197 = smul.addr %s196, 4
        %s198 = scalar_lea.vmem [#allocation5], %s197
        %p199 = scmp.lt.s32.totalorder %s20, 2
        %s200 = scalar_select %p199, %s20, 2
        %s201 = scalar_lea.vmem %s2, %s200
        %v203 = vlaneseq
        %v204 = vand.u32 %v203, 127
        %v205 = vcvt.s32.f32 %v204
        %v206 = vmul.f32 %v205, -0.071955785
        %v207 = vmul.f32 %v206, 1.442695
        %v208 = vpow.pop %v207
        %v209 = vld [vmem:[%s0] sm:$0xff]
        %211 = vset.pattern.permute.xlu0 0
        %212 = vperm.xlu0 %211, %v209
        %v213 = vpop.permute.xlu0 %212
        %v215 = vmul.f32 %v213, %v208
        %v216 = vand.u32 2147483647, %v215
        %vm217 = vcmp.le.f32.partialorder %v216, 0.7853982
        %vm218 = vcmp.lt.s32.totalorder %v215, 0
        %v219 = vand.u32 %v215, 2139095040
        %v220 = vshrl.u32 %v219, 23
        %v221 = vsub.s32 %v220, 127
        %v222 = vand.u32 2147483647, %v215
        %v223 = vand.u32 %v222, 8388607
        %v224 = vor.u32 %v223, 8388608
        %v225 = vsub.s32 0, %v224
        %v226 = vadd.s32 %v221, 1
        %vm227 = vcmp.gt.s32.totalorder %v226, 0
        %v228 = vsel %vm227, %v226, 0
        %v229 = vshrl.u32 %v228, 5
        %v230 = vand.u32 %v228, 31
        %v231 = vsub.s32 32, %v230
        %v232 = vshrl.u32 683565275, %v231
        %v233 = vshll.u32 683565275, %v230
        %v234 = vshrl.u32 2475754826, %v231
        %v235 = vor.u32 %v233, %v234
        %v236 = vshll.u32 2475754826, %v230
        %v237 = vshrl.u32 2131351028, %v231
        %v238 = vor.u32 %v236, %v237
        %v239 = vshll.u32 2131351028, %v230
        %v240 = vshrl.u32 2102212464, %v231
        %v241 = vor.u32 %v239, %v240
        %v242 = vshll.u32 2102212464, %v230
        %v243 = vshrl.u32 920167782, %v231
        %v244 = vor.u32 %v242, %v243
        %v245 = vshll.u32 920167782, %v230
        %v246 = vshrl.u32 1326507024, %v231
        %v247 = vor.u32 %v245, %v246
        %vm248 = vcmp.lt.s32.totalorder %v229, 1
        %vm249 = vcmp.lt.s32.totalorder %v229, 2
        %vm250 = vcmp.lt.s32.totalorder %v229, 3
        %vm251 = vcmp.lt.s32.totalorder %v229, 4
        %v252 = vsel %vm248, %v232, %v235
        %v253 = vsel %vm251, %v241, 2102212464
        %v254 = vsel %vm250, %v238, %v253
        %v255 = vsel %vm249, %v252, %v254
        %v256 = vsel %vm248, %v235, %v238
        %v257 = vsel %vm251, %v244, 920167782
        %v258 = vsel %vm250, %v241, %v257
        %v259 = vsel %vm249, %v256, %v258
        %v260 = vsel %vm248, %v238, %v241
        %v261 = vsel %vm251, %v247, 1326507024
        %v262 = vsel %vm250, %v244, %v261
        %v263 = vsel %vm249, %v260, %v262
        %v264 = vshll.u32 %v224, 8
        %v265 = vmul.u32.u64.compose %v264, %v263
        %v266 = vextract.low.u32 %v265
        %v267 = vextract.high.u32 %v265
        %v268 = vmul.u32.u64.compose %v264, %v259
        %v269 = vextract.low.u32 %v268
        %v270 = vextract.high.u32 %v268
        %v271 = vmul.u32 %v264, %v255
        %v272 = vadd.s32 %v267, %v269
        %vm273 = vc.u32 %v267, %v269
        %v274 = vadd.s32 %v270, 1
        %v275 = vsel %vm273, %v274, %v270
        %v276 = vadd.s32 %v271, %v275
        %v277 = vadd.s32 %v276, 536870912
        %v278 = vshrl.u32 %v277, 30
        %v279 = vshll.u32 %v278, 30
        %v280 = vsub.s32 %v276, %v279
        %vm281 = vcmp.lt.s32.totalorder %v280, 0
        %v282 = vsub.s32 0, %v280
        %v283 = vsel %vm281, %v282, %v280
        %v284 = vclz %v283
        %v285 = vsub.s32 %v284, 2
        %vm286 = vcmp.gt.s32.totalorder 0, %v285
        %v287 = vsel %vm286, 0, %v285
        %v288 = vsub.s32 32, %v287
        %v289 = vshll.u32 %v280, %v287
        %v290 = vshrl.u32 %v272, %v288
        %v291 = vor.u32 %v289, %v290
        %v292 = vsub.s32 4294967266, %v287
        %v293 = vadd.s32 %v292, 127
        %v294 = vshll.u32 %v293, 23
        %v295 = vor.u32 4788187, %v294
        %v296 = vand.u32 2147483647, %v295
        %v298 = vcvt.s32.f32 %v291
        %v299 = vmul.f32 %v298, %v296
        %v300 = vxor.u32 %v299, 2147483648
        %v301 = vsel %vm218, %v300, %v299
        %v302 = vsub.s32 4, %v278
        %v303 = vsel %vm218, %v302, %v278
        %v304 = vsel %vm217, %v215, %v301
        %v305 = vsel %vm217, 0, %v303
        %v306 = vcosq.f32.pop %v304
        %v307 = vsinq.f32.pop %v304
        %vm308 = vweird.f32 %v215
        %v309 = vand.u32 %v305, 3
        %vm310 = vcmp.lt.s32.totalorder %v309, 2
        %vm311 = vcmp.eq.s32.totalorder %v309, 0
        %v312 = vxor.u32 %v307, 2147483648
        %v313 = vsel %vm311, %v306, %v312
        %vm314 = vcmp.eq.s32.totalorder %v309, 2
        %v315 = vxor.u32 %v306, 2147483648
        %v316 = vsel %vm314, %v315, %v307
        %v317 = vsel %vm310, %v313, %v316
        %v318 = vsel %vm308, nan, %v317
        %v319 = vpack.c.bf16 %v318, %v318
        %v320 = vld [vmem:[%s173] sm:$0xf]
        %v321 = vld [vmem:[%s173 + $0x4] sm:$0xf]
        %v322 = vld [vmem:[%s173 + $0x8] sm:$0xf]
        %v323 = vld [vmem:[%s173 + $0xc] sm:$0xf]
        %v324 = vld [vmem:[%s173 + $0x10] sm:$0xf]
        %v325 = vld [vmem:[%s173 + $0x14] sm:$0xf]
        %v326 = vld [vmem:[%s173 + $0x18] sm:$0xf]
        %v327 = vld [vmem:[%s173 + $0x1c] sm:$0xf]
        %v328 = vld [vmem:[%s173 + $0x20] sm:$0xf]
        %v329 = vld [vmem:[%s173 + $0x24] sm:$0xf]
        %v330 = vld [vmem:[%s173 + $0x28] sm:$0xf]
        %v331 = vld [vmem:[%s173 + $0x2c] sm:$0xf]
        %v332 = vld [vmem:[%s173 + $0x30] sm:$0xf]
        %v333 = vld [vmem:[%s173 + $0x34] sm:$0xf]
        %v334 = vld [vmem:[%s173 + $0x38] sm:$0xf]
        %v335 = vld [vmem:[%s173 + $0x3c] sm:$0xf]
        %v336 = vand.u32 2147483647, %v215
        %vm337 = vcmp.le.f32.partialorder %v336, 0.7853982
        %vm338 = vcmp.lt.s32.totalorder %v215, 0
        %v339 = vand.u32 %v215, 2139095040
        %v340 = vshrl.u32 %v339, 23
        %v341 = vsub.s32 %v340, 127
        %v342 = vand.u32 2147483647, %v215
        %v343 = vand.u32 %v342, 8388607
        %v344 = vor.u32 %v343, 8388608
        %v345 = vsub.s32 0, %v344
        %v346 = vadd.s32 %v341, 1
        %vm347 = vcmp.gt.s32.totalorder %v346, 0
        %v348 = vsel %vm347, %v346, 0
        %v349 = vshrl.u32 %v348, 5
        %v350 = vand.u32 %v348, 31
        %v351 = vsub.s32 32, %v350
        %v352 = vshrl.u32 683565275, %v351
        %v353 = vshll.u32 683565275, %v350
        %v354 = vshrl.u32 2475754826, %v351
        %v355 = vor.u32 %v353, %v354
        %v356 = vshll.u32 2475754826, %v350
        %v357 = vshrl.u32 2131351028, %v351
        %v358 = vor.u32 %v356, %v357
        %v359 = vshll.u32 2131351028, %v350
        %v360 = vshrl.u32 2102212464, %v351
        %v361 = vor.u32 %v359, %v360
        %v362 = vshll.u32 2102212464, %v350
        %v363 = vshrl.u32 920167782, %v351
        %v364 = vor.u32 %v362, %v363
        %v365 = vshll.u32 920167782, %v350
        %v366 = vshrl.u32 1326507024, %v351
        %v367 = vor.u32 %v365, %v366
        %vm368 = vcmp.lt.s32.totalorder %v349, 1
        %vm369 = vcmp.lt.s32.totalorder %v349, 2
        %vm370 = vcmp.lt.s32.totalorder %v349, 3
        %vm371 = vcmp.lt.s32.totalorder %v349, 4
        %v372 = vsel %vm368, %v352, %v355
        %v373 = vsel %vm371, %v361, 2102212464
        %v374 = vsel %vm370, %v358, %v373
        %v375 = vsel %vm369, %v372, %v374
        %v376 = vsel %vm368, %v355, %v358
        %v377 = vsel %vm371, %v364, 920167782
        %v378 = vsel %vm370, %v361, %v377
        %v379 = vsel %vm369, %v376, %v378
        %v380 = vsel %vm368, %v358, %v361
        %v381 = vsel %vm371, %v367, 1326507024
        %v382 = vsel %vm370, %v364, %v381
        %v383 = vsel %vm369, %v380, %v382
        %v384 = vshll.u32 %v344, 8
        %v385 = vmul.u32.u64.compose %v384, %v383
        %v386 = vextract.low.u32 %v385
        %v387 = vextract.high.u32 %v385
        %v388 = vmul.u32.u64.compose %v384, %v379
        %v389 = vextract.low.u32 %v388
        %v390 = vextract.high.u32 %v388
        %v391 = vmul.u32 %v384, %v375
        %v392 = vadd.s32 %v387, %v389
        %vm393 = vc.u32 %v387, %v389
        %v394 = vadd.s32 %v390, 1
        %v395 = vsel %vm393, %v394, %v390
        %v396 = vadd.s32 %v391, %v395
        %v397 = vadd.s32 %v396, 536870912
        %v398 = vshrl.u32 %v397, 30
        %v399 = vshll.u32 %v398, 30
        %v400 = vsub.s32 %v396, %v399
        %vm401 = vcmp.lt.s32.totalorder %v400, 0
        %v402 = vsub.s32 0, %v400
        %v403 = vsel %vm401, %v402, %v400
        %v404 = vclz %v403
        %v405 = vsub.s32 %v404, 2
        %vm406 = vcmp.gt.s32.totalorder 0, %v405
        %v407 = vsel %vm406, 0, %v405
        %v408 = vsub.s32 32, %v407
        %v409 = vshll.u32 %v400, %v407
        %v410 = vshrl.u32 %v392, %v408
        %v411 = vor.u32 %v409, %v410
        %v412 = vsub.s32 4294967266, %v407
        %v413 = vadd.s32 %v412, 127
        %v414 = vshll.u32 %v413, 23
        %v415 = vor.u32 4788187, %v414
        %v416 = vand.u32 2147483647, %v415
        %v418 = vcvt.s32.f32 %v411
        %v419 = vmul.f32 %v418, %v416
        %v420 = vxor.u32 %v419, 2147483648
        %v421 = vsel %vm338, %v420, %v419
        %v422 = vsub.s32 4, %v398
        %v423 = vsel %vm338, %v422, %v398
        %v424 = vsel %vm337, %v215, %v421
        %v425 = vsel %vm337, 0, %v423
        %v426 = vcosq.f32.pop %v424
        %v427 = vsinq.f32.pop %v424
        %vm428 = vweird.f32 %v215
        %v429 = vadd.s32 %v425, 3
        %v430 = vand.u32 %v429, 3
        %vm431 = vcmp.lt.s32.totalorder %v430, 2
        %vm432 = vcmp.eq.s32.totalorder %v430, 0
        %v433 = vxor.u32 %v427, 2147483648
        %v434 = vsel %vm432, %v426, %v433
        %vm435 = vcmp.eq.s32.totalorder %v430, 2
        %v436 = vxor.u32 %v426, 2147483648
        %v437 = vsel %vm435, %v436, %v427
        %v438 = vsel %vm431, %v434, %v437
        %v439 = vsel %vm428, nan, %v438
        %v440 = vpack.c.bf16 %v439, %v439
        %v441 = vld [vmem:[%s173 + $0x40] sm:$0xf]
        %v442 = vld [vmem:[%s173 + $0x44] sm:$0xf]
        %v443 = vld [vmem:[%s173 + $0x48] sm:$0xf]
        %v444 = vld [vmem:[%s173 + $0x4c] sm:$0xf]
        %v445 = vld [vmem:[%s173 + $0x50] sm:$0xf]
        %v446 = vld [vmem:[%s173 + $0x54] sm:$0xf]
        %v447 = vld [vmem:[%s173 + $0x58] sm:$0xf]
        %v448 = vld [vmem:[%s173 + $0x5c] sm:$0xf]
        %v449 = vld [vmem:[%s173 + $0x60] sm:$0xf]
        %v450 = vld [vmem:[%s173 + $0x64] sm:$0xf]
        %v451 = vld [vmem:[%s173 + $0x68] sm:$0xf]
        %v452 = vld [vmem:[%s173 + $0x6c] sm:$0xf]
        %v453 = vld [vmem:[%s173 + $0x70] sm:$0xf]
        %v454 = vld [vmem:[%s173 + $0x74] sm:$0xf]
        %v455 = vld [vmem:[%s173 + $0x78] sm:$0xf]
        %v456 = vld [vmem:[%s173 + $0x7c] sm:$0xf]
        %v473 = vunpack.c.l.b16 %v441
        %v474 = vunpack.c.l.b16 %v442
        %v475 = vunpack.c.l.b16 %v443
        %v476 = vunpack.c.l.b16 %v444
        %v477 = vunpack.c.l.b16 %v445
        %v478 = vunpack.c.l.b16 %v446
        %v479 = vunpack.c.l.b16 %v447
        %v480 = vunpack.c.l.b16 %v448
        %v481 = vunpack.c.l.b16 %v449
        %v482 = vunpack.c.l.b16 %v450
        %v483 = vunpack.c.l.b16 %v451
        %v484 = vunpack.c.l.b16 %v452
        %v485 = vunpack.c.l.b16 %v453
        %v486 = vunpack.c.l.b16 %v454
        %v487 = vunpack.c.l.b16 %v455
        %v488 = vunpack.c.l.b16 %v456
        %v489 = vpack.c.b16 %v474, %v473
        %v490 = vpack.c.b16 %v476, %v475
        %v491 = vpack.c.b16 %v478, %v477
        %v492 = vpack.c.b16 %v480, %v479
        %v493 = vpack.c.b16 %v482, %v481
        %v494 = vpack.c.b16 %v484, %v483
        %v495 = vpack.c.b16 %v486, %v485
        %v496 = vpack.c.b16 %v488, %v487
        %505 = vmatprep.subr.bf16.mxu0 0
        %506 = vmatpush1.bf16.msra.mxu0 %v496
        %507 = vmatprep.subr.bf16.mxu0 0
        %508 = vmatpush1.bf16.msra.mxu0 %v495
        %509 = vmatprep.subr.bf16.mxu0 0
        %510 = vmatpush1.bf16.msra.mxu0 %v494
        %511 = vmatprep.subr.bf16.mxu0 0
        %512 = vmatpush1.bf16.msra.mxu0 %v493
        %513 = vmatprep.subr.bf16.mxu0 0
        %514 = vmatpush1.bf16.msra.mxu0 %v492
        %515 = vmatprep.subr.bf16.mxu0 0
        %516 = vmatpush1.bf16.msra.mxu0 %v491
        %517 = vmatprep.subr.bf16.mxu0 0
        %518 = vmatpush1.bf16.msra.mxu0 %v490
        %519 = vmatprep.subr.bf16.mxu0 0
        %520 = vmatpush1.bf16.msra.mxu0 %v489
        %521 = vmatprep.subr.bf16.mxu0 0
        %522 = vmatpush2.bf16.msra.mxu0 0
        %523 = vmatprep.subr.bf16.mxu0 0
        %524 = vmatpush2.bf16.msra.mxu0 0
        %525 = vmatprep.subr.bf16.mxu0 0
        %526 = vmatpush2.bf16.msra.mxu0 0
        %527 = vmatprep.subr.bf16.mxu0 0
        %528 = vmatpush2.bf16.msra.mxu0 0
        %529 = vmatprep.subr.bf16.mxu0 0
        %530 = vmatpush2.bf16.msra.mxu0 0
        %531 = vmatprep.subr.bf16.mxu0 0
        %532 = vmatpush2.bf16.msra.mxu0 0
        %533 = vmatprep.subr.bf16.mxu0 0
        %534 = vmatpush2.bf16.msra.mxu0 0
        %535 = vmatprep.subr.bf16.mxu0 0
        %536 = vmatpush2.bf16.msra.mxu0 0
        %537 = vmatprep.mubr.bf16.mxu0 0
        %538 = vmatmul.mubr.bf16.gmra.mxu0 %v440
        %v539 = vpop.f32.mrf.mxu0
        %v540 = vadd.f32 0.0, %v539
        %v541 = vpop.f32.mrf.mxu0
        %v542 = vpop.f32.mrf.mxu0
        %v543 = vpop.f32.mrf.mxu0
        %544 = vdwg.mxu0
        %v561 = vunpack.c.l.b16 %v320
        %v562 = vunpack.c.l.b16 %v321
        %v563 = vunpack.c.l.b16 %v322
        %v564 = vunpack.c.l.b16 %v323
        %v565 = vunpack.c.l.b16 %v324
        %v566 = vunpack.c.l.b16 %v325
        %v567 = vunpack.c.l.b16 %v326
        %v568 = vunpack.c.l.b16 %v327
        %v569 = vunpack.c.l.b16 %v328
        %v570 = vunpack.c.l.b16 %v329
        %v571 = vunpack.c.l.b16 %v330
        %v572 = vunpack.c.l.b16 %v331
        %v573 = vunpack.c.l.b16 %v332
        %v574 = vunpack.c.l.b16 %v333
        %v575 = vunpack.c.l.b16 %v334
        %v576 = vunpack.c.l.b16 %v335
        %v577 = vpack.c.b16 %v562, %v561
        %v578 = vpack.c.b16 %v564, %v563
        %v579 = vpack.c.b16 %v566, %v565
        %v580 = vpack.c.b16 %v568, %v567
        %v581 = vpack.c.b16 %v570, %v569
        %v582 = vpack.c.b16 %v572, %v571
        %v583 = vpack.c.b16 %v574, %v573
        %v584 = vpack.c.b16 %v576, %v575
        %593 = vmatprep.subr.bf16.mxu0 0
        %594 = vmatpush1.bf16.msra.mxu0 %v584
        %595 = vmatprep.subr.bf16.mxu0 0
        %596 = vmatpush1.bf16.msra.mxu0 %v583
        %597 = vmatprep.subr.bf16.mxu0 0
        %598 = vmatpush1.bf16.msra.mxu0 %v582
        %599 = vmatprep.subr.bf16.mxu0 0
        %600 = vmatpush1.bf16.msra.mxu0 %v581
        %601 = vmatprep.subr.bf16.mxu0 0
        %602 = vmatpush1.bf16.msra.mxu0 %v580
        %603 = vmatprep.subr.bf16.mxu0 0
        %604 = vmatpush1.bf16.msra.mxu0 %v579
        %605 = vmatprep.subr.bf16.mxu0 0
        %606 = vmatpush1.bf16.msra.mxu0 %v578
        %607 = vmatprep.subr.bf16.mxu0 0
        %608 = vmatpush1.bf16.msra.mxu0 %v577
        %609 = vmatprep.subr.bf16.mxu0 0
        %610 = vmatpush2.bf16.msra.mxu0 0
        %611 = vmatprep.subr.bf16.mxu0 0
        %612 = vmatpush2.bf16.msra.mxu0 0
        %613 = vmatprep.subr.bf16.mxu0 0
        %614 = vmatpush2.bf16.msra.mxu0 0
        %615 = vmatprep.subr.bf16.mxu0 0
        %616 = vmatpush2.bf16.msra.mxu0 0
        %617 = vmatprep.subr.bf16.mxu0 0
        %618 = vmatpush2.bf16.msra.mxu0 0
        %619 = vmatprep.subr.bf16.mxu0 0
        %620 = vmatpush2.bf16.msra.mxu0 0
        %621 = vmatprep.subr.bf16.mxu0 0
        %622 = vmatpush2.bf16.msra.mxu0 0
        %623 = vmatprep.subr.bf16.mxu0 0
        %624 = vmatpush2.bf16.msra.mxu0 0
        %625 = vmatprep.mubr.bf16.mxu0 0
        %626 = vmatmul.mubr.bf16.gmra.mxu0 %v319
        %v627 = vpop.f32.mrf.mxu0
        %v628 = vadd.f32 %v540, %v627
        %v629 = vpop.f32.mrf.mxu0
        %v630 = vpop.f32.mrf.mxu0
        %v631 = vpop.f32.mrf.mxu0
        %632 = vdwg.mxu0
        %v633 = vld [vmem:[%s201] sm:$0x1]
        %v635 = vlaneseq
        %v636 = vshrl.u32 %v635, 7
        %v637 = vsub.s32 0, %v636
        %v638 = vrot.slane %v633, %v637
        %v640 = vadd.f32 %v628, %v638
        %v641 = vxor.u32 %v640, 2147483648
        %v642 = vmul.f32 %v641, 1.442695
        %v643 = vpow.pop %v642
        %v644 = vadd.f32 %v643, 1.0
        %v645 = vrcp.pop %v644
        %v646 = vmul.f32 1.0, %v645
        %v647 = vmul.f32 %v640, %v646
        %v648 = vpack.c.bf16 %v647, %v647
        %649 = vst [vmem:[%s198] sm:$0xf] %v648
        %s650 = sand.u32 %s101, 1
        %s651 = scalar_lea.sflag [#allocation4], %s650
        %s652 = sand.u32 %s101, 1
        %s653 = smul.addr %s652, 4
        %s654 = scalar_lea.vmem [#allocation5], %s653
        // Predicated region
        $region37: #{tpu_custom_call.1} parent=31 // pred_check
          %p655 = pneg %p111
        $region38: #{tpu_custom_call.1} parent=31 // pred_check_branch
          %657 = sbr.rel (%p655) target = $region40
        $region39: #{tpu_custom_call.1} parent=31 // pred_region
          %s659 = ssub.s32 64, 64
          %660 = vsyncadd %s651, %s659
          %s661 = smul.addr %s20, 64
          %s662 = scalar_lea.hbm %s3, %s661
          %s664 = sshll.u32 %s654, 4
          %s665 = int_to_ptr.vmem [resolvable:$true] %s664
          %667 = dma.vmem_to_hbm [thread:$0]  %s665, 64, %s662, %s651
        $region40: #{tpu_custom_call.1} parent=31 // pred_fallthru
          _
      $region32: #{tpu_custom_call.1} parent=5 // pred_fallthru
        _
      %p668 = scmp.le.s32.totalorder 2, %s15
      // Predicated region
      $region41: #{tpu_custom_call.1} parent=5 // pred_check
        %p669 = pneg %p668
      $region42: #{tpu_custom_call.1} parent=5 // pred_check_branch
        %671 = sbr.rel (%p669) target = $region44
      $region43: #{tpu_custom_call.1} parent=5 // pred_region
        %s672 = ssub.s32 %s15, 2
        // Predicated region
        $region45: #{tpu_custom_call.1} parent=43 // pred_check
          %p673 = pneg %p117
        $region46: #{tpu_custom_call.1} parent=43 // pred_check_branch
          %675 = sbr.rel (%p673) target = $region48
        $region47: #{tpu_custom_call.1} parent=43 // pred_region
          %s676 = sand.u32 %s102, 1
          %s677 = scalar_lea.sflag [#allocation4], %s676
          %s678 = sand.u32 %s102, 1
          %s679 = smul.addr %s678, 4
          %s680 = scalar_lea.vmem [#allocation5], %s679
          %681 = dma.done %s677, 64
        $region48: #{tpu_custom_call.1} parent=43 // pred_fallthru
          _
      $region44: #{tpu_custom_call.1} parent=5 // pred_fallthru
        _
    $region6: #{tpu_custom_call.1} parent=1 // loop_footer
      %s19 = sadd.s32 1, %s15
    $region7: #{tpu_custom_call.1} parent=1 // loop_footer_branch
      %14 = sbr.rel target = $region3
    $region8: #{tpu_custom_call.1} parent=1 // loop_exit
      _
    %682 = vsyncpa [#allocation3], 1
    %s683 = scalar_lea.sflag [#allocation3], 1
    %684 = vsyncpa %s683, 1
    %685 = vsyncpa [#allocation4], 1
    %s686 = scalar_lea.sflag [#allocation4], 1
    %687 = vsyncpa %s686, 1

</llo_original>
